<compile_context>
chip_gen: v7x
topology: tpu7x:2x2x1
jax: 0.10.0
libtpu: 0.0.40
codegen_flags: <defaults>
</compile_context>

<pallas_src>
import functools

import jax
import jax.numpy as jnp
from jax.experimental import pallas as pl
from jax.experimental.pallas import tpu as pltpu

_MIB = 1024 * 1024


def _lane_pad(c):
    # narrow feature dims still occupy a full 128-lane vreg / VMEM tile
    return max(int(c), 128)


# --------------------- fully fused forward (Ahat-resident) ------------------

def _gcn_fused_kernel(a_ref, x_ref, w1_ref, b1_ref, w2_ref, b2_ref, o_ref):
    """Entire GCN forward in one kernel; everything stays in VMEM."""
    a = a_ref[...]                                           # (N, N) bf16

    # ---- conv1: H = relu(Ahat @ (X W1) + b1) ----
    xw1 = jnp.dot(x_ref[...], w1_ref[...],
                  preferred_element_type=jnp.float32).astype(jnp.bfloat16)
    h = jnp.dot(a, xw1, preferred_element_type=jnp.float32) + b1_ref[...]
    h = jnp.maximum(h, 0.0).astype(jnp.bfloat16)

    # F.dropout(p=0.6, training=False) -> identity at inference.
    # TODO(synk): stochastic dropout via pltpu.prng_random_bits for training.

    # ---- conv2: Z = Ahat @ (H W2) + b2 ----
    hw2 = jnp.dot(h, w2_ref[...],
                  preferred_element_type=jnp.float32).astype(jnp.bfloat16)
    z = jnp.dot(a, hw2, preferred_element_type=jnp.float32) + b2_ref[...]

    # ---- log_softmax (f32 epilogue) ----
    m = jnp.max(z, axis=-1, keepdims=True)
    z = z - m
    o_ref[...] = z - jnp.log(jnp.sum(jnp.exp(z), axis=-1, keepdims=True))


def _fused_vmem_bytes(N, F, H, C):
    fp, hp, cp = _lane_pad(F), _lane_pad(H), _lane_pad(C)
    return (N * N * 2             # Ahat bf16 (resident)
            + N * fp * 2          # X bf16
            + N * hp * 4          # H intermediate (f32 worst case)
            + N * cp * 4          # output f32
            + fp * hp * 2 + hp * cp * 2 + (hp + cp) * 4)


@jax.jit
def gcn_forward_fused(x, a_hat_bf16, params):
    """Single pallas_call; valid while Ahat + all intermediates fit VMEM."""
    N, F = x.shape
    H = params["w1"].shape[1]
    C = params["w2"].shape[1]

    xb = x.astype(jnp.bfloat16)
    w1 = params["w1"].astype(jnp.bfloat16)
    w2 = params["w2"].astype(jnp.bfloat16)
    b1 = params["b1"].reshape(1, H)
    b2 = params["b2"].reshape(1, C)

    vmem_limit = int(min(max(2 * _fused_vmem_bytes(N, F, H, C) + 4 * _MIB,
                             32 * _MIB), 64 * _MIB))

    return pl.pallas_call(
        _gcn_fused_kernel,
        out_shape=jax.ShapeDtypeStruct((N, C), jnp.float32),
        in_specs=[pl.BlockSpec((N, N), lambda: (0, 0)),
                  pl.BlockSpec((N, F), lambda: (0, 0)),
                  pl.BlockSpec((F, H), lambda: (0, 0)),
                  pl.BlockSpec((1, H), lambda: (0, 0)),
                  pl.BlockSpec((H, C), lambda: (0, 0)),
                  pl.BlockSpec((1, C), lambda: (0, 0))],
        out_specs=pl.BlockSpec((N, C), lambda: (0, 0)),
        compiler_params=pltpu.CompilerParams(vmem_limit_bytes=vmem_limit),
    )(a_hat_bf16, xb, w1, b1, w2, b2)


# ------------------ per-layer fused kernels (scalable path) -----------------

def _xw_kernel(x_ref, w_ref, o_ref):
    """Row-tiled feature transform: XW[tile] = X[tile] @ W."""
    o_ref[...] = jnp.dot(x_ref[...], w_ref[...],
                         preferred_element_type=jnp.float32).astype(o_ref.dtype)


def feature_transform(x_bf16, w_bf16, *, tile_m=None):
    N, F = x_bf16.shape
    C = w_bf16.shape[1]
    if tile_m is None:
        tile_m = N if N <= 512 else 512
    grid = (pl.cdiv(N, tile_m),)
    return pl.pallas_call(
        _xw_kernel,
        out_shape=jax.ShapeDtypeStruct((N, C), jnp.bfloat16),
        grid=grid,
        in_specs=[pl.BlockSpec((tile_m, F), lambda i: (i, 0)),
                  pl.BlockSpec((F, C), lambda i: (0, 0))],
        out_specs=pl.BlockSpec((tile_m, C), lambda i: (i, 0)),
        compiler_params=pltpu.CompilerParams(
            dimension_semantics=("parallel",)),
    )(x_bf16, w_bf16)


def _gcn_agg_kernel(a_ref, xw_ref, b_ref, o_ref, *, apply_relu,
                    apply_log_softmax):
    """out_tile = Ahat[tile] @ XW + b  [; relu] [; log_softmax]."""
    out = jnp.dot(a_ref[...], xw_ref[...],
                  preferred_element_type=jnp.float32) + b_ref[...]
    if apply_relu:
        out = jnp.maximum(out, 0.0)
    if apply_log_softmax:
        m = jnp.max(out, axis=-1, keepdims=True)
        out = out - m
        out = out - jnp.log(jnp.sum(jnp.exp(out), axis=-1, keepdims=True))
    o_ref[...] = out.astype(o_ref.dtype)


def _pick_tile_m(N, C):
    """Largest row tile whose VMEM footprint fits every TPU generation."""
    if N <= 1024:
        return N                       # single / full-height blocks
    cp = _lane_pad(C)
    budget = 40 * _MIB                 # conservative (v7x physical is 64 MiB)
    for tm in (1024, 512, 256):
        need = 2 * tm * N * 2 + 2 * N * cp * 2 + 2 * tm * cp * 4
        if need <= budget:
            return tm
    # TODO(synk): K-tile the neighbor (Ahat column) axis with an f32
    # accumulator (reduction axis last, "arbitrary") so tile_m can stay >=512
    # for very large N instead of falling back to small row tiles.
    return 256


def gcn_layer(a_hat_bf16, x_bf16, w_bf16, bias, *, apply_relu,
              apply_log_softmax, out_dtype, tile_m=None):
    N = a_hat_bf16.shape[0]
    C = w_bf16.shape[1]

    # (1) XW computed once by a tiny row-parallel kernel and passed as an
    #     input: keeps the aggregation grid axis "parallel" (megacore) and
    #     evicts X / W / scratch from the aggregation kernel's VMEM budget.
    xw = feature_transform(x_bf16, w_bf16)

    # (2) Stream Ahat row tiles (HBM-bound) and fuse bias / ReLU / log_softmax
    #     into the aggregation epilogue.
    if tile_m is None:
        tile_m = _pick_tile_m(N, C)
    grid = (pl.cdiv(N, tile_m),)
    bias2d = bias.reshape(1, C)

    cp = _lane_pad(C)
    vmem_need = (2 * tile_m * N * 2      # double-buffered bf16 Ahat row tile
                 + 2 * N * cp * 2        # resident XW (lane-padded, x2 slack)
                 + 2 * tile_m * cp * 4   # output tile (f32 worst case)
                 + 2 * cp * 4)           # bias
    vmem_limit = int(min(max(vmem_need + 4 * _MIB, 32 * _MIB), 64 * _MIB))

    # TODO(synk): for sparse production graphs, replace the dense Ahat stream
    # with a scalar-prefetch neighbor-list SpMM (PrefetchScalarGridSpec);
    # optionally store Ahat as fp8 (v7x) / int8 0/1 + row scaling (v5e/v6e)
    # to further cut the dominant HBM operand.
    return pl.pallas_call(
        functools.partial(_gcn_agg_kernel, apply_relu=apply_relu,
                          apply_log_softmax=apply_log_softmax),
        out_shape=jax.ShapeDtypeStruct((N, C), out_dtype),
        grid=grid,
        in_specs=[pl.BlockSpec((tile_m, N), lambda i: (i, 0)),   # Ahat tile
                  pl.BlockSpec((N, C), lambda i: (0, 0)),        # XW resident
                  pl.BlockSpec((1, C), lambda i: (0, 0))],       # bias
        out_specs=pl.BlockSpec((tile_m, C), lambda i: (i, 0)),
        compiler_params=pltpu.CompilerParams(
            dimension_semantics=("parallel",),
            vmem_limit_bytes=vmem_limit),
    )(a_hat_bf16, xw, bias2d)


@jax.jit
def gcn_forward_layered(x, a_hat_bf16, params):
    """Two fused pallas_calls per GCN layer (XW transform + Ahat aggregation)."""
    h = gcn_layer(a_hat_bf16, x.astype(jnp.bfloat16),
                  params["w1"].astype(jnp.bfloat16), params["b1"],
                  apply_relu=True, apply_log_softmax=False,
                  out_dtype=jnp.bfloat16)
    # F.dropout(p=0.6, training=False) -> identity at inference.
    return gcn_layer(a_hat_bf16, h,
                     params["w2"].astype(jnp.bfloat16), params["b2"],
                     apply_relu=False, apply_log_softmax=True,
                     out_dtype=jnp.float32)


def gcn_forward(x, a_hat_bf16, params):
    """Dispatch: keep Ahat resident in VMEM whenever the whole forward fits."""
    N, F = x.shape
    H = params["w1"].shape[1]
    C = params["w2"].shape[1]
    if _fused_vmem_bytes(N, F, H, C) <= 40 * _MIB:
        return gcn_forward_fused(x, a_hat_bf16, params)
    return gcn_forward_layered(x, a_hat_bf16, params)


# ------------------------------- JAX glue -----------------------------------

def gcn_normalize(edge_index, num_nodes, dtype=jnp.bfloat16):
    """Dense symmetric-normalized adjacency with self-loops (PyG gcn_norm).

    Built once (outside jit) directly in its storage dtype so no per-forward
    N^2 f32->bf16 convert hits HBM.
    """
    a = jnp.zeros((num_nodes, num_nodes), jnp.float32)
    a = a.at[edge_index[0], edge_index[1]].set(1.0)
    diag = jnp.arange(num_nodes)
    a = a.at[diag, diag].set(1.0)            # add_remaining_self_loops semantics
    deg = jnp.sum(a, axis=1)
    dinv = jnp.where(deg > 0, 1.0 / jnp.sqrt(deg), 0.0)
    return (a * dinv[:, None] * dinv[None, :]).astype(dtype)


def glorot(key, shape):
    fan_in, fan_out = shape
    limit = jnp.sqrt(6.0 / (fan_in + fan_out))
    return jax.random.uniform(key, shape, jnp.float32, -limit, limit)


def init_params(key, num_node_features, h_feats, num_classes):
    k1, k2 = jax.random.split(key)
    return {
        "w1": glorot(k1, (num_node_features, h_feats)),
        "b1": jnp.zeros((h_feats,), jnp.float32),
        "w2": glorot(k2, (h_feats, num_classes)),
        "b2": jnp.zeros((num_classes,), jnp.float32),
    }


def gcn_reference(x, a_hat, params):
    """Pure-JAX f32 reference (loose numerical sanity check)."""
    h = jnp.maximum(a_hat @ (x @ params["w1"]) + params["b1"], 0.0)
    z = a_hat @ (h @ params["w2"]) + params["b2"]
    return jax.nn.log_softmax(z, axis=-1)


# --------------------------------- main --------------------------------------

if __name__ == "__main__":
    N, F_IN, H, C = 64, 16, 32, 8

    key = jax.random.PRNGKey(0)
    kx, kp = jax.random.split(key)

    x = jax.random.normal(kx, (N, F_IN), dtype=jnp.float32)

    # Synthetic undirected ring graph: edges (i, i+1) and (i+1, i).
    src = jnp.arange(N, dtype=jnp.int32)
    dst = (src + 1) % N
    edge_index = jnp.stack([jnp.concatenate([src, dst]),
                            jnp.concatenate([dst, src])])

    a_hat_bf16 = gcn_normalize(edge_index, N)                   # storage dtype
    a_hat_f32 = gcn_normalize(edge_index, N, dtype=jnp.float32)  # reference only
    params = init_params(kp, F_IN, H, C)

    out = gcn_forward(x, a_hat_bf16, params)                # fused path at N=64
    out_layered = gcn_forward_layered(x, a_hat_bf16, params)  # exercise big path
    jax.block_until_ready((out, out_layered))

    assert out.shape == (N, C)
    assert out_layered.shape == (N, C)
    # sanity: log_softmax rows should exp-sum to ~1
    assert bool(jnp.allclose(jnp.sum(jnp.exp(out), axis=1), 1.0, atol=1e-3))
    assert bool(jnp.allclose(jnp.sum(jnp.exp(out_layered), axis=1), 1.0, atol=1e-3))
    # both Pallas paths share the same bf16 inputs -> near-identical results
    assert bool(jnp.allclose(out, out_layered, atol=2e-3))
    # loose check vs pure-f32 reference (bf16 matmul operands, f32 accumulation)
    ref = gcn_reference(x, a_hat_f32, params)
    assert bool(jnp.allclose(out, ref, atol=0.1))

    print("KERNEL_OK")
</pallas_src>

<mosaic_0001>
module attributes {stable_mosaic.version = 11 : i64} {
  func.func @_gcn_fused_kernel(%arg0: memref<64x64xbf16, #tpu.memory_space<vmem>>, %arg1: memref<64x16xbf16, #tpu.memory_space<vmem>>, %arg2: memref<16x32xbf16, #tpu.memory_space<vmem>>, %arg3: memref<1x32xf32, #tpu.memory_space<vmem>>, %arg4: memref<32x8xbf16, #tpu.memory_space<vmem>>, %arg5: memref<1x8xf32, #tpu.memory_space<vmem>>, %arg6: memref<64x8xf32, #tpu.memory_space<vmem>>) attributes {dimension_semantics = [], scalar_prefetch = 0 : i64, scratch_operands = 0 : i64, tpu.core_type = #tpu.core_type<tc>} {
    %c0 = arith.constant 0 : index
    %c0_0 = arith.constant 0 : index
    %0 = vector.load %arg0[%c0, %c0_0] : memref<64x64xbf16, #tpu.memory_space<vmem>>, vector<64x64xbf16>
    %c0_1 = arith.constant 0 : index
    %c0_2 = arith.constant 0 : index
    %1 = vector.load %arg1[%c0_1, %c0_2] : memref<64x16xbf16, #tpu.memory_space<vmem>>, vector<64x16xbf16>
    %c0_3 = arith.constant 0 : index
    %c0_4 = arith.constant 0 : index
    %2 = vector.load %arg2[%c0_3, %c0_4] : memref<16x32xbf16, #tpu.memory_space<vmem>>, vector<16x32xbf16>
    %cst = arith.constant dense<0.000000e+00> : vector<64x32xf32>
    %3 = tpu.matmul %1, %2, %cst {dimension_numbers = #tpu.dot_dimension_numbers<[1], [0], [0], [1], [0, 0, 1, 1], [], []>} : vector<64x16xbf16>, vector<16x32xbf16>, vector<64x32xf32> -> vector<64x32xf32>
    %4 = arith.truncf %3 : vector<64x32xf32> to vector<64x32xbf16>
    %cst_5 = arith.constant dense<0.000000e+00> : vector<64x32xf32>
    %5 = tpu.matmul %0, %4, %cst_5 {dimension_numbers = #tpu.dot_dimension_numbers<[1], [0], [0], [1], [0, 0, 1, 1], [], []>} : vector<64x64xbf16>, vector<64x32xbf16>, vector<64x32xf32> -> vector<64x32xf32>
    %c0_6 = arith.constant 0 : index
    %c0_7 = arith.constant 0 : index
    %6 = vector.load %arg3[%c0_6, %c0_7] : memref<1x32xf32, #tpu.memory_space<vmem>>, vector<1x32xf32>
    %7 = vector.broadcast %6 : vector<1x32xf32> to vector<64x32xf32>
    %8 = arith.addf %5, %7 : vector<64x32xf32>
    %cst_8 = arith.constant 0.000000e+00 : f32
    %9 = vector.broadcast %cst_8 : f32 to vector<64x32xf32>
    %10 = arith.maximumf %8, %9 : vector<64x32xf32>
    %11 = arith.truncf %10 : vector<64x32xf32> to vector<64x32xbf16>
    %c0_9 = arith.constant 0 : index
    %c0_10 = arith.constant 0 : index
    %12 = vector.load %arg4[%c0_9, %c0_10] : memref<32x8xbf16, #tpu.memory_space<vmem>>, vector<32x8xbf16>
    %cst_11 = arith.constant dense<0.000000e+00> : vector<64x8xf32>
    %13 = tpu.matmul %11, %12, %cst_11 {dimension_numbers = #tpu.dot_dimension_numbers<[1], [0], [0], [1], [0, 0, 1, 1], [], []>} : vector<64x32xbf16>, vector<32x8xbf16>, vector<64x8xf32> -> vector<64x8xf32>
    %14 = arith.truncf %13 : vector<64x8xf32> to vector<64x8xbf16>
    %cst_12 = arith.constant dense<0.000000e+00> : vector<64x8xf32>
    %15 = tpu.matmul %0, %14, %cst_12 {dimension_numbers = #tpu.dot_dimension_numbers<[1], [0], [0], [1], [0, 0, 1, 1], [], []>} : vector<64x64xbf16>, vector<64x8xbf16>, vector<64x8xf32> -> vector<64x8xf32>
    %c0_13 = arith.constant 0 : index
    %c0_14 = arith.constant 0 : index
    %16 = vector.load %arg5[%c0_13, %c0_14] : memref<1x8xf32, #tpu.memory_space<vmem>>, vector<1x8xf32>
    %17 = vector.broadcast %16 : vector<1x8xf32> to vector<64x8xf32>
    %18 = arith.addf %15, %17 : vector<64x8xf32>
    %cst_15 = arith.constant dense<0xFF800000> : vector<64xf32>
    %19 = vector.multi_reduction <maximumf>, %18, %cst_15 [1] : vector<64x8xf32> to vector<64xf32>
    %20 = vector.shape_cast %19 : vector<64xf32> to vector<64x1xf32>
    %21 = vector.broadcast %20 : vector<64x1xf32> to vector<64x8xf32>
    %22 = arith.subf %18, %21 : vector<64x8xf32>
    %23 = math.exp %22 : vector<64x8xf32>
    %cst_16 = arith.constant dense<0.000000e+00> : vector<64xf32>
    %24 = vector.multi_reduction <add>, %23, %cst_16 [1] : vector<64x8xf32> to vector<64xf32>
    %25 = vector.shape_cast %24 : vector<64xf32> to vector<64x1xf32>
    %26 = math.log %25 : vector<64x1xf32>
    %27 = vector.broadcast %26 : vector<64x1xf32> to vector<64x8xf32>
    %28 = arith.subf %22, %27 : vector<64x8xf32>
    %c0_17 = arith.constant 0 : index
    %c0_18 = arith.constant 0 : index
    %29 = vector.load %arg6[%c0_17, %c0_18] : memref<64x8xf32, #tpu.memory_space<vmem>>, vector<64x8xf32>
    tpu.vector_store %arg6[%c0_17, %c0_18], %28 {strides = array<i32>} : memref<64x8xf32, #tpu.memory_space<vmem>>, vector<64x8xf32>,
    return
  }
}

</mosaic_0001>

<llo_original>
// kernel: gcn_forward_fused.1
$region0: #{gcn_forward_fused.1}
  #allocation0 [shape = 'u32[]', space=smem, size = 0x4, offset = 0x4, fixed_abs, tag = 'smem constant byte address 0x4 - core index']
  #allocation1 [shape = 'u32[144,128]{1,0:T(1,128)}', space=vmem, size = 0x12000, scoped, tag = 'internal scratch']
  %s0 = inlined_call_operand.vmem [shape: bf16[64,64], index: 0, kind: input, shape index: {}]
  %s1 = inlined_call_operand.vmem [shape: bf16[64,16], index: 1, kind: input, shape index: {}]
  %s2 = inlined_call_operand.vmem [shape: bf16[16,32], index: 2, kind: input, shape index: {}]
  %s3 = inlined_call_operand.vmem [shape: f32[1,32], index: 3, kind: input, shape index: {}]
  %s4 = inlined_call_operand.vmem [shape: bf16[32,8], index: 4, kind: input, shape index: {}]
  %s5 = inlined_call_operand.vmem [shape: f32[1,8], index: 5, kind: input, shape index: {}]
  %s6 = inlined_call_operand.vmem [shape: f32[64,8], index: 6, kind: output, shape index: {}]
  %s7 = sld [smem:[#allocation0]]
  $region34: #{gcn_forward_fused.1} parent=0
    _
  %s9 = ssub.s32 1, %s7
  %s10 = scalar_select 0, %s9, %s7
  // Predicated region
  $region2: #{gcn_forward_fused.1} parent=0 // pred_check
    _
  $region3: #{gcn_forward_fused.1} parent=0 // pred_check_branch
    %12 = sbr.rel (0) target = $region5
  $region4: #{gcn_forward_fused.1} parent=0 // pred_region
    _
  $region5: #{gcn_forward_fused.1} parent=0 // pred_fallthru
    _
  // Predicated region
  $region6: #{gcn_forward_fused.1} parent=0 // pred_check
    _
  $region7: #{gcn_forward_fused.1} parent=0 // pred_check_branch
    %14 = sbr.rel (0) target = $region9
  $region8: #{gcn_forward_fused.1} parent=0 // pred_region
    _
  $region9: #{gcn_forward_fused.1} parent=0 // pred_fallthru
    _
  // Predicated region
  $region10: #{gcn_forward_fused.1} parent=0 // pred_check
    _
  $region11: #{gcn_forward_fused.1} parent=0 // pred_check_branch
    %16 = sbr.rel (0) target = $region13
  $region12: #{gcn_forward_fused.1} parent=0 // pred_region
    _
  $region13: #{gcn_forward_fused.1} parent=0 // pred_fallthru
    _
  // Predicated region
  $region14: #{gcn_forward_fused.1} parent=0 // pred_check
    _
  $region15: #{gcn_forward_fused.1} parent=0 // pred_check_branch
    %18 = sbr.rel (0) target = $region17
  $region16: #{gcn_forward_fused.1} parent=0 // pred_region
    _
  $region17: #{gcn_forward_fused.1} parent=0 // pred_fallthru
    _
  // Predicated region
  $region18: #{gcn_forward_fused.1} parent=0 // pred_check
    _
  $region19: #{gcn_forward_fused.1} parent=0 // pred_check_branch
    %20 = sbr.rel (0) target = $region21
  $region20: #{gcn_forward_fused.1} parent=0 // pred_region
    _
  $region21: #{gcn_forward_fused.1} parent=0 // pred_fallthru
    _
  // Predicated region
  $region22: #{gcn_forward_fused.1} parent=0 // pred_check
    _
  $region23: #{gcn_forward_fused.1} parent=0 // pred_check_branch
    %22 = sbr.rel (0) target = $region25
  $region24: #{gcn_forward_fused.1} parent=0 // pred_region
    _
  $region25: #{gcn_forward_fused.1} parent=0 // pred_fallthru
    _
  %v24 = vld [vmem:[%s0] sm:$0xf]
  %v25 = vld [vmem:[%s0 + $0x4] sm:$0xf]
  %v26 = vld [vmem:[%s0 + $0x8] sm:$0xf]
  %v27 = vld [vmem:[%s0 + $0xc] sm:$0xf]
  %v28 = vld [vmem:[%s0 + $0x10] sm:$0xf]
  %v29 = vld [vmem:[%s0 + $0x14] sm:$0xf]
  %v30 = vld [vmem:[%s0 + $0x18] sm:$0xf]
  %v31 = vld [vmem:[%s0 + $0x1c] sm:$0xf]
  %v32 = vld [vmem:[%s1] sm:$0xf]
  %v33 = vld [vmem:[%s1 + $0x4] sm:$0xf]
  %v34 = vld [vmem:[%s1 + $0x8] sm:$0xf]
  %v35 = vld [vmem:[%s1 + $0xc] sm:$0xf]
  %v36 = vld [vmem:[%s1 + $0x10] sm:$0xf]
  %v37 = vld [vmem:[%s1 + $0x14] sm:$0xf]
  %v38 = vld [vmem:[%s1 + $0x18] sm:$0xf]
  %v39 = vld [vmem:[%s1 + $0x1c] sm:$0xf]
  %v40 = vld [vmem:[%s2] sm:$0xf]
  %v41 = vld [vmem:[%s2 + $0x4] sm:$0xf]
  %v50 = vunpack.c.l.b16 %v32
  %v51 = vunpack.c.l.b16 %v33
  %v52 = vunpack.c.l.b16 %v34
  %v53 = vunpack.c.l.b16 %v35
  %v54 = vunpack.c.l.b16 %v36
  %v55 = vunpack.c.l.b16 %v37
  %v56 = vunpack.c.l.b16 %v38
  %v57 = vunpack.c.l.b16 %v39
  %v58 = vpack.c.b16 %v51, %v50
  %v59 = vpack.c.b16 %v53, %v52
  %v60 = vpack.c.b16 %v55, %v54
  %v61 = vpack.c.b16 %v57, %v56
  %v64 = vunpack.c.l.b16 %v40
  %v65 = vunpack.c.l.b16 %v41
  %v66 = vpack.c.b16 %v65, %v64
  %vm68 = vcmask 130048
  %v70 = vsel %vm68, %v58, 0
  %v73 = vsel %vm68, %v59, 0
  %v76 = vsel %vm68, %v60, 0
  %v79 = vsel %vm68, %v61, 0
  %81 = vmatprep.subr.bf16.mxu0 0
  %82 = vmatpush1.bf16.msra.mxu0 %v66
  %83 = vmatprep.subr.bf16.mxu0 0
  %84 = vmatpush1.bf16.msra.mxu0 0
  %85 = vmatprep.subr.bf16.mxu0 0
  %86 = vmatpush1.bf16.msra.mxu0 0
  %87 = vmatprep.subr.bf16.mxu0 0
  %88 = vmatpush1.bf16.msra.mxu0 0
  %89 = vmatprep.subr.bf16.mxu0 0
  %90 = vmatpush1.bf16.msra.mxu0 0
  %91 = vmatprep.subr.bf16.mxu0 0
  %92 = vmatpush1.bf16.msra.mxu0 0
  %93 = vmatprep.subr.bf16.mxu0 0
  %94 = vmatpush1.bf16.msra.mxu0 0
  %95 = vmatprep.subr.bf16.mxu0 0
  %96 = vmatpush1.bf16.msra.mxu0 0
  %97 = vmatprep.subr.bf16.mxu0 0
  %98 = vmatpush1.bf16.msra.mxu0 0
  %99 = vmatprep.subr.bf16.mxu0 0
  %100 = vmatpush1.bf16.msra.mxu0 0
  %101 = vmatprep.subr.bf16.mxu0 0
  %102 = vmatpush1.bf16.msra.mxu0 0
  %103 = vmatprep.subr.bf16.mxu0 0
  %104 = vmatpush1.bf16.msra.mxu0 0
  %105 = vmatprep.subr.bf16.mxu0 0
  %106 = vmatpush1.bf16.msra.mxu0 0
  %107 = vmatprep.subr.bf16.mxu0 0
  %108 = vmatpush1.bf16.msra.mxu0 0
  %109 = vmatprep.subr.bf16.mxu0 0
  %110 = vmatpush1.bf16.msra.mxu0 0
  %111 = vmatprep.subr.bf16.mxu0 0
  %112 = vmatpush1.bf16.msra.mxu0 0
  %113 = vmatprep.mubr.bf16.mxu0 0
  %114 = vmatmul.mubr.bf16.gmra.mrb[0].mxu0 %v70
  %v115 = vpop.f32.mrb[0].mxu0
  %v116 = vadd.f32 0.0, %v115
  %v117 = vpop.f32.mrb[0].mxu0
  %v118 = vpop.f32.mrb[0].mxu0
  %v119 = vadd.f32 0.0, %v118
  %v120 = vpop.f32.mrb[0].mxu0
  %121 = vmatprep.mubr.bf16.mxu0 0
  %122 = vmatmul.mubr.bf16.gmra.mrb[0].mxu0 %v73
  %v123 = vpop.f32.mrb[0].mxu0
  %v124 = vadd.f32 0.0, %v123
  %v125 = vpop.f32.mrb[0].mxu0
  %v126 = vpop.f32.mrb[0].mxu0
  %v127 = vadd.f32 0.0, %v126
  %v128 = vpop.f32.mrb[0].mxu0
  %129 = vmatprep.mubr.bf16.mxu0 0
  %130 = vmatmul.mubr.bf16.gmra.mrb[0].mxu0 %v76
  %v131 = vpop.f32.mrb[0].mxu0
  %v132 = vadd.f32 0.0, %v131
  %v133 = vpop.f32.mrb[0].mxu0
  %v134 = vpop.f32.mrb[0].mxu0
  %v135 = vadd.f32 0.0, %v134
  %v136 = vpop.f32.mrb[0].mxu0
  %137 = vmatprep.mubr.bf16.mxu0 0
  %138 = vmatmul.mubr.bf16.gmra.mrb[0].mxu0 %v79
  %v139 = vpop.f32.mrb[0].mxu0
  %v140 = vadd.f32 0.0, %v139
  %v141 = vpop.f32.mrb[0].mxu0
  %v142 = vpop.f32.mrb[0].mxu0
  %v143 = vadd.f32 0.0, %v142
  %v144 = vpop.f32.mrb[0].mxu0
  %145 = vdwg.mxu0
  %v146 = vpack.c.bf16 %v119, %v116
  %v147 = vpack.c.bf16 %v127, %v124
  %v148 = vpack.c.bf16 %v135, %v132
  %v149 = vpack.c.bf16 %v143, %v140
  %v150 = vld [vmem:[%s3] sm:$0x1]
  %v152 = vlaneseq
  %v153 = vshrl.u32 %v152, 7
  %v154 = vsub.s32 0, %v153
  %v155 = vrot.slane %v150, %v154
  %v165 = vunpack.c.l.b16 %v24
  %v166 = vunpack.c.l.b16 %v25
  %v167 = vunpack.c.l.b16 %v26
  %v168 = vunpack.c.l.b16 %v27
  %v169 = vunpack.c.l.b16 %v28
  %v170 = vunpack.c.l.b16 %v29
  %v171 = vunpack.c.l.b16 %v30
  %v172 = vunpack.c.l.b16 %v31
  %v173 = vpack.c.b16 %v166, %v165
  %v174 = vpack.c.b16 %v168, %v167
  %v175 = vpack.c.b16 %v170, %v169
  %v176 = vpack.c.b16 %v172, %v171
  %vm177 = vcmask 523264
  %v179 = vsel %vm177, %v173, 0
  %v182 = vsel %vm177, %v174, 0
  %v185 = vsel %vm177, %v175, 0
  %v188 = vsel %vm177, %v176, 0
  %190 = vmatprep.subr.bf16.mxu0 0
  %191 = vmatpush1.bf16.msra.mxu0 %v146
  %192 = vmatprep.subr.bf16.mxu0 0
  %193 = vmatpush1.bf16.msra.mxu0 %v147
  %194 = vmatprep.subr.bf16.mxu0 0
  %195 = vmatpush1.bf16.msra.mxu0 %v148
  %196 = vmatprep.subr.bf16.mxu0 0
  %197 = vmatpush1.bf16.msra.mxu0 %v149
  %198 = vmatprep.subr.bf16.mxu0 0
  %199 = vmatpush1.bf16.msra.mxu0 0
  %200 = vmatprep.subr.bf16.mxu0 0
  %201 = vmatpush1.bf16.msra.mxu0 0
  %202 = vmatprep.subr.bf16.mxu0 0
  %203 = vmatpush1.bf16.msra.mxu0 0
  %204 = vmatprep.subr.bf16.mxu0 0
  %205 = vmatpush1.bf16.msra.mxu0 0
  %206 = vmatprep.subr.bf16.mxu0 0
  %207 = vmatpush1.bf16.msra.mxu0 0
  %208 = vmatprep.subr.bf16.mxu0 0
  %209 = vmatpush1.bf16.msra.mxu0 0
  %210 = vmatprep.subr.bf16.mxu0 0
  %211 = vmatpush1.bf16.msra.mxu0 0
  %212 = vmatprep.subr.bf16.mxu0 0
  %213 = vmatpush1.bf16.msra.mxu0 0
  %214 = vmatprep.subr.bf16.mxu0 0
  %215 = vmatpush1.bf16.msra.mxu0 0
  %216 = vmatprep.subr.bf16.mxu0 0
  %217 = vmatpush1.bf16.msra.mxu0 0
  %218 = vmatprep.subr.bf16.mxu0 0
  %219 = vmatpush1.bf16.msra.mxu0 0
  %220 = vmatprep.subr.bf16.mxu0 0
  %221 = vmatpush1.bf16.msra.mxu0 0
  %222 = vmatprep.mubr.bf16.mxu0 0
  %223 = vmatmul.mubr.bf16.gmra.mrb[0].mxu0 %v179
  %v224 = vpop.f32.mrb[0].mxu0
  %v225 = vadd.f32 %v155, %v224
  %v226 = vpop.f32.mrb[0].mxu0
  %v227 = vpop.f32.mrb[0].mxu0
  %v228 = vadd.f32 %v155, %v227
  %v229 = vpop.f32.mrb[0].mxu0
  %230 = vmatprep.mubr.bf16.mxu0 0
  %231 = vmatmul.mubr.bf16.gmra.mrb[0].mxu0 %v182
  %v232 = vpop.f32.mrb[0].mxu0
  %v233 = vadd.f32 %v155, %v232
  %v234 = vpop.f32.mrb[0].mxu0
  %v235 = vpop.f32.mrb[0].mxu0
  %v236 = vadd.f32 %v155, %v235
  %v237 = vpop.f32.mrb[0].mxu0
  %238 = vmatprep.mubr.bf16.mxu0 0
  %239 = vmatmul.mubr.bf16.gmra.mrb[0].mxu0 %v185
  %v240 = vpop.f32.mrb[0].mxu0
  %v241 = vadd.f32 %v155, %v240
  %v242 = vpop.f32.mrb[0].mxu0
  %v243 = vpop.f32.mrb[0].mxu0
  %v244 = vadd.f32 %v155, %v243
  %v245 = vpop.f32.mrb[0].mxu0
  %246 = vmatprep.mubr.bf16.mxu0 0
  %247 = vmatmul.mubr.bf16.gmra.mrb[0].mxu0 %v188
  %v248 = vpop.f32.mrb[0].mxu0
  %v249 = vadd.f32 %v155, %v248
  %v250 = vpop.f32.mrb[0].mxu0
  %v251 = vpop.f32.mrb[0].mxu0
  %v252 = vadd.f32 %v155, %v251
  %v253 = vpop.f32.mrb[0].mxu0
  %254 = vdwg.mxu0
  %v255 = vmax.f32 %v225, 0.0
  %v256 = vmax.f32 %v228, 0.0
  %v257 = vmax.f32 %v233, 0.0
  %v258 = vmax.f32 %v236, 0.0
  %v259 = vmax.f32 %v241, 0.0
  %v260 = vmax.f32 %v244, 0.0
  %v261 = vmax.f32 %v249, 0.0
  %v262 = vmax.f32 %v252, 0.0
  %v263 = vpack.c.bf16 %v256, %v255
  %v264 = vpack.c.bf16 %v258, %v257
  %v265 = vpack.c.bf16 %v260, %v259
  %v266 = vpack.c.bf16 %v262, %v261
  %v267 = vld [vmem:[%s4] sm:$0xf]
  %v268 = vld [vmem:[%s4 + $0x4] sm:$0xf]
  %v269 = vld [vmem:[%s4 + $0x8] sm:$0xf]
  %v270 = vld [vmem:[%s4 + $0xc] sm:$0xf]
  %v275 = vunpack.c.l.b16 %v267
  %v276 = vunpack.c.l.b16 %v268
  %v277 = vunpack.c.l.b16 %v269
  %v278 = vunpack.c.l.b16 %v270
  %v279 = vpack.c.b16 %v276, %v275
  %v280 = vpack.c.b16 %v278, %v277
  %vm283 = vcmask 261120
  %v285 = vsel %vm283, %v263, 0
  %v288 = vsel %vm283, %v264, 0
  %v291 = vsel %vm283, %v265, 0
  %v294 = vsel %vm283, %v266, 0
  %296 = vmatprep.subr.bf16.mxu0 0
  %297 = vmatpush1.bf16.msra.mxu0 %v279
  %298 = vmatprep.subr.bf16.mxu0 0
  %299 = vmatpush1.bf16.msra.mxu0 %v280
  %300 = vmatprep.subr.bf16.mxu0 0
  %301 = vmatpush1.bf16.msra.mxu0 0
  %302 = vmatprep.subr.bf16.mxu0 0
  %303 = vmatpush1.bf16.msra.mxu0 0
  %304 = vmatprep.subr.bf16.mxu0 0
  %305 = vmatpush1.bf16.msra.mxu0 0
  %306 = vmatprep.subr.bf16.mxu0 0
  %307 = vmatpush1.bf16.msra.mxu0 0
  %308 = vmatprep.subr.bf16.mxu0 0
  %309 = vmatpush1.bf16.msra.mxu0 0
  %310 = vmatprep.subr.bf16.mxu0 0
  %311 = vmatpush1.bf16.msra.mxu0 0
  %312 = vmatprep.subr.bf16.mxu0 0
  %313 = vmatpush1.bf16.msra.mxu0 0
  %314 = vmatprep.subr.bf16.mxu0 0
  %315 = vmatpush1.bf16.msra.mxu0 0
  %316 = vmatprep.subr.bf16.mxu0 0
  %317 = vmatpush1.bf16.msra.mxu0 0
  %318 = vmatprep.subr.bf16.mxu0 0
  %319 = vmatpush1.bf16.msra.mxu0 0
  %320 = vmatprep.subr.bf16.mxu0 0
  %321 = vmatpush1.bf16.msra.mxu0 0
  %322 = vmatprep.subr.bf16.mxu0 0
  %323 = vmatpush1.bf16.msra.mxu0 0
  %324 = vmatprep.subr.bf16.mxu0 0
  %325 = vmatpush1.bf16.msra.mxu0 0
  %326 = vmatprep.subr.bf16.mxu0 0
  %327 = vmatpush1.bf16.msra.mxu0 0
  %328 = vmatprep.mubr.bf16.mxu0 0
  %329 = vmatmul.mubr.bf16.gmra.mrb[0].mxu0 %v285
  %v330 = vpop.f32.mrb[0].mxu0
  %v331 = vadd.f32 0.0, %v330
  %v332 = vpop.f32.mrb[0].mxu0
  %v333 = vpop.f32.mrb[0].mxu0
  %v334 = vadd.f32 0.0, %v333
  %v335 = vpop.f32.mrb[0].mxu0
  %336 = vmatprep.mubr.bf16.mxu0 0
  %337 = vmatmul.mubr.bf16.gmra.mrb[0].mxu0 %v288
  %v338 = vpop.f32.mrb[0].mxu0
  %v339 = vadd.f32 0.0, %v338
  %v340 = vpop.f32.mrb[0].mxu0
  %v341 = vpop.f32.mrb[0].mxu0
  %v342 = vadd.f32 0.0, %v341
  %v343 = vpop.f32.mrb[0].mxu0
  %344 = vmatprep.mubr.bf16.mxu0 0
  %345 = vmatmul.mubr.bf16.gmra.mrb[0].mxu0 %v291
  %v346 = vpop.f32.mrb[0].mxu0
  %v347 = vadd.f32 0.0, %v346
  %v348 = vpop.f32.mrb[0].mxu0
  %v349 = vpop.f32.mrb[0].mxu0
  %v350 = vadd.f32 0.0, %v349
  %v351 = vpop.f32.mrb[0].mxu0
  %352 = vmatprep.mubr.bf16.mxu0 0
  %353 = vmatmul.mubr.bf16.gmra.mrb[0].mxu0 %v294
  %v354 = vpop.f32.mrb[0].mxu0
  %v355 = vadd.f32 0.0, %v354
  %v356 = vpop.f32.mrb[0].mxu0
  %v357 = vpop.f32.mrb[0].mxu0
  %v358 = vadd.f32 0.0, %v357
  %v359 = vpop.f32.mrb[0].mxu0
  %360 = vdwg.mxu0
  %v361 = vpack.c.bf16 %v334, %v331
  %v362 = vpack.c.bf16 %v342, %v339
  %v363 = vpack.c.bf16 %v350, %v347
  %v364 = vpack.c.bf16 %v358, %v355
  %v365 = vld [vmem:[%s5] sm:$0x1]
  %v367 = vlaneseq
  %v368 = vshrl.u32 %v367, 7
  %v369 = vsub.s32 0, %v368
  %v370 = vrot.slane %v365, %v369
  %372 = vmatprep.subr.bf16.mxu0 0
  %373 = vmatpush1.bf16.msra.mxu0 %v361
  %374 = vmatprep.subr.bf16.mxu0 0
  %375 = vmatpush1.bf16.msra.mxu0 %v362
  %376 = vmatprep.subr.bf16.mxu0 0
  %377 = vmatpush1.bf16.msra.mxu0 %v363
  %378 = vmatprep.subr.bf16.mxu0 0
  %379 = vmatpush1.bf16.msra.mxu0 %v364
  %380 = vmatprep.subr.bf16.mxu0 0
  %381 = vmatpush1.bf16.msra.mxu0 0
  %382 = vmatprep.subr.bf16.mxu0 0
  %383 = vmatpush1.bf16.msra.mxu0 0
  %384 = vmatprep.subr.bf16.mxu0 0
  %385 = vmatpush1.bf16.msra.mxu0 0
  %386 = vmatprep.subr.bf16.mxu0 0
  %387 = vmatpush1.bf16.msra.mxu0 0
  %388 = vmatprep.subr.bf16.mxu0 0
  %389 = vmatpush1.bf16.msra.mxu0 0
  %390 = vmatprep.subr.bf16.mxu0 0
  %391 = vmatpush1.bf16.msra.mxu0 0
  %392 = vmatprep.subr.bf16.mxu0 0
  %393 = vmatpush1.bf16.msra.mxu0 0
  %394 = vmatprep.subr.bf16.mxu0 0
  %395 = vmatpush1.bf16.msra.mxu0 0
  %396 = vmatprep.subr.bf16.mxu0 0
  %397 = vmatpush1.bf16.msra.mxu0 0
  %398 = vmatprep.subr.bf16.mxu0 0
  %399 = vmatpush1.bf16.msra.mxu0 0
  %400 = vmatprep.subr.bf16.mxu0 0
  %401 = vmatpush1.bf16.msra.mxu0 0
  %402 = vmatprep.subr.bf16.mxu0 0
  %403 = vmatpush1.bf16.msra.mxu0 0
  %404 = vmatprep.mubr.bf16.mxu0 0
  %405 = vmatmul.mubr.bf16.gmra.mrb[0].mxu0 %v179
  %v406 = vpop.f32.mrb[0].mxu0
  %v407 = vadd.f32 %v370, %v406
  %v408 = vpop.f32.mrb[0].mxu0
  %v409 = vpop.f32.mrb[0].mxu0
  %v410 = vadd.f32 %v370, %v409
  %v411 = vpop.f32.mrb[0].mxu0
  %412 = vmatprep.mubr.bf16.mxu0 0
  %413 = vmatmul.mubr.bf16.gmra.mrb[0].mxu0 %v182
  %v414 = vpop.f32.mrb[0].mxu0
  %v415 = vadd.f32 %v370, %v414
  %v416 = vpop.f32.mrb[0].mxu0
  %v417 = vpop.f32.mrb[0].mxu0
  %v418 = vadd.f32 %v370, %v417
  %v419 = vpop.f32.mrb[0].mxu0
  %420 = vmatprep.mubr.bf16.mxu0 0
  %421 = vmatmul.mubr.bf16.gmra.mrb[0].mxu0 %v185
  %v422 = vpop.f32.mrb[0].mxu0
  %v423 = vadd.f32 %v370, %v422
  %v424 = vpop.f32.mrb[0].mxu0
  %v425 = vpop.f32.mrb[0].mxu0
  %v426 = vadd.f32 %v370, %v425
  %v427 = vpop.f32.mrb[0].mxu0
  %428 = vmatprep.mubr.bf16.mxu0 0
  %429 = vmatmul.mubr.bf16.gmra.mrb[0].mxu0 %v188
  %v430 = vpop.f32.mrb[0].mxu0
  %v431 = vadd.f32 %v370, %v430
  %v432 = vpop.f32.mrb[0].mxu0
  %v433 = vpop.f32.mrb[0].mxu0
  %v434 = vadd.f32 %v370, %v433
  %v435 = vpop.f32.mrb[0].mxu0
  %436 = vdwg.mxu0
  %vm437 = vcmask 64512
  %v438 = vsel %vm437, %v407, -inf
  %439 = vmax.xlane.f32.xlu0 %v438
  %v440 = vpop.xlane.xlu0 %439
  %v441 = vsel %vm437, %v410, -inf
  %442 = vmax.xlane.f32.xlu0 %v441
  %v443 = vpop.xlane.xlu0 %442
  %v444 = vsel %vm437, %v415, -inf
  %445 = vmax.xlane.f32.xlu0 %v444
  %v446 = vpop.xlane.xlu0 %445
  %v447 = vsel %vm437, %v418, -inf
  %448 = vmax.xlane.f32.xlu0 %v447
  %v449 = vpop.xlane.xlu0 %448
  %v450 = vsel %vm437, %v423, -inf
  %451 = vmax.xlane.f32.xlu0 %v450
  %v452 = vpop.xlane.xlu0 %451
  %v453 = vsel %vm437, %v426, -inf
  %454 = vmax.xlane.f32.xlu0 %v453
  %v455 = vpop.xlane.xlu0 %454
  %v456 = vsel %vm437, %v431, -inf
  %457 = vmax.xlane.f32.xlu0 %v456
  %v458 = vpop.xlane.xlu0 %457
  %v459 = vsel %vm437, %v434, -inf
  %460 = vmax.xlane.f32.xlu0 %v459
  %v461 = vpop.xlane.xlu0 %460
  %v462 = vsub.f32 %v407, %v440
  %v463 = vsub.f32 %v410, %v443
  %v464 = vsub.f32 %v415, %v446
  %v465 = vsub.f32 %v418, %v449
  %v466 = vsub.f32 %v423, %v452
  %v467 = vsub.f32 %v426, %v455
  %v468 = vsub.f32 %v431, %v458
  %v469 = vsub.f32 %v434, %v461
  %v470 = vmul.f32 %v462, 1.442695
  %v471 = vpow.pop %v470
  %v472 = vmul.f32 %v463, 1.442695
  %v473 = vpow.pop %v472
  %v474 = vmul.f32 %v464, 1.442695
  %v475 = vpow.pop %v474
  %v476 = vmul.f32 %v465, 1.442695
  %v477 = vpow.pop %v476
  %v478 = vmul.f32 %v466, 1.442695
  %v479 = vpow.pop %v478
  %v480 = vmul.f32 %v467, 1.442695
  %v481 = vpow.pop %v480
  %v482 = vmul.f32 %v468, 1.442695
  %v483 = vpow.pop %v482
  %v484 = vmul.f32 %v469, 1.442695
  %v485 = vpow.pop %v484
  %v486 = vsel %vm437, %v471, 0.0
  %487 = vadd.xlane.f32.xlu0 %v486
  %v488 = vpop.xlane.xlu0 %487
  %v489 = vsel %vm437, %v473, 0.0
  %490 = vadd.xlane.f32.xlu0 %v489
  %v491 = vpop.xlane.xlu0 %490
  %v492 = vsel %vm437, %v475, 0.0
  %493 = vadd.xlane.f32.xlu0 %v492
  %v494 = vpop.xlane.xlu0 %493
  %v495 = vsel %vm437, %v477, 0.0
  %496 = vadd.xlane.f32.xlu0 %v495
  %v497 = vpop.xlane.xlu0 %496
  %v498 = vsel %vm437, %v479, 0.0
  %499 = vadd.xlane.f32.xlu0 %v498
  %v500 = vpop.xlane.xlu0 %499
  %v501 = vsel %vm437, %v481, 0.0
  %502 = vadd.xlane.f32.xlu0 %v501
  %v503 = vpop.xlane.xlu0 %502
  %v504 = vsel %vm437, %v483, 0.0
  %505 = vadd.xlane.f32.xlu0 %v504
  %v506 = vpop.xlane.xlu0 %505
  %v507 = vsel %vm437, %v485, 0.0
  %508 = vadd.xlane.f32.xlu0 %v507
  %v509 = vpop.xlane.xlu0 %508
  %v510 = vlog2.pop %v488
  %v511 = vmul.f32 %v510, 0.6931472
  %v512 = vlog2.pop %v491
  %v513 = vmul.f32 %v512, 0.6931472
  %v514 = vlog2.pop %v494
  %v515 = vmul.f32 %v514, 0.6931472
  %v516 = vlog2.pop %v497
  %v517 = vmul.f32 %v516, 0.6931472
  %v518 = vlog2.pop %v500
  %v519 = vmul.f32 %v518, 0.6931472
  %v520 = vlog2.pop %v503
  %v521 = vmul.f32 %v520, 0.6931472
  %v522 = vlog2.pop %v506
  %v523 = vmul.f32 %v522, 0.6931472
  %v524 = vlog2.pop %v509
  %v525 = vmul.f32 %v524, 0.6931472
  %v526 = vsub.f32 %v462, %v511
  %v527 = vsub.f32 %v463, %v513
  %v528 = vsub.f32 %v464, %v515
  %v529 = vsub.f32 %v465, %v517
  %v530 = vsub.f32 %v466, %v519
  %v531 = vsub.f32 %v467, %v521
  %v532 = vsub.f32 %v468, %v523
  %v533 = vsub.f32 %v469, %v525
  %534 = vst.msk [vmem:[%s6] sm:$0xff] %vm437, %v526
  %535 = vst.msk [vmem:[%s6 + $0x8] sm:$0xff] %vm437, %v527
  %536 = vst.msk [vmem:[%s6 + $0x10] sm:$0xff] %vm437, %v528
  %537 = vst.msk [vmem:[%s6 + $0x18] sm:$0xff] %vm437, %v529
  %538 = vst.msk [vmem:[%s6 + $0x20] sm:$0xff] %vm437, %v530
  %539 = vst.msk [vmem:[%s6 + $0x28] sm:$0xff] %vm437, %v531
  %540 = vst.msk [vmem:[%s6 + $0x30] sm:$0xff] %vm437, %v532
  %541 = vst.msk [vmem:[%s6 + $0x38] sm:$0xff] %vm437, %v533
  // Predicated region
  $region26: #{gcn_forward_fused.1} parent=0 // pred_check
    _
  $region27: #{gcn_forward_fused.1} parent=0 // pred_check_branch
    %543 = sbr.rel (0) target = $region29
  $region28: #{gcn_forward_fused.1} parent=0 // pred_region
    _
  $region29: #{gcn_forward_fused.1} parent=0 // pred_fallthru
    _
  // Predicated region
  $region30: #{gcn_forward_fused.1} parent=0 // pred_check
    _
  $region31: #{gcn_forward_fused.1} parent=0 // pred_check_branch
    %545 = sbr.rel (0) target = $region33
  $region32: #{gcn_forward_fused.1} parent=0 // pred_region
    _
  $region33: #{gcn_forward_fused.1} parent=0 // pred_fallthru
    _

</llo_original>
